<compile_context>
chip_gen: v7x
topology: tpu7x:2x2x1
jax: 0.10.0
libtpu: 0.0.40
codegen_flags: <defaults>
</compile_context>

<pallas_src>
import functools

import jax
import jax.numpy as jnp
from jax.experimental import pallas as pl
from jax.experimental.pallas import tpu as pltpu


def _autoencoder_kernel(x_ref, w1_ref, b1_ref, w2_ref, b2_ref, o_ref, *scratch,
                        stage_intermediate: bool):
    # encoded = relu(x @ W1 + b1); W1 is pre-transposed to [E, H] ([in, out]).
    h = jnp.dot(x_ref[...], w1_ref[...], preferred_element_type=jnp.float32)
    h = jnp.maximum(h + b1_ref[...].astype(jnp.float32), 0.0)
    h = h.astype(x_ref.dtype)
    if stage_intermediate:
        # Large tiles only: stage through VMEM scratch to bound vreg pressure.
        h_ref, = scratch
        h_ref[...] = h
        h = h_ref[...]
    # decoded = relu(h @ W2 + b2); W2 is pre-transposed to [H, E].
    d = jnp.dot(h, w2_ref[...], preferred_element_type=jnp.float32)
    d = jnp.maximum(d + b2_ref[...].astype(jnp.float32), 0.0)
    o_ref[...] = d.astype(o_ref.dtype)


def prepare_params(w1, b1, w2, b2, dtype=None):
    """One-time conversion from PyTorch nn.Linear layout (W [out, in], b [out]) to the
    kernel layout (W [in, out], b [1, out]).  Call at parameter-load time, NOT per
    forward.  Pass dtype=jnp.bfloat16 on v6e/v7x for the memory-bound win."""
    p = (w1.T, b1.reshape(1, -1), w2.T, b2.reshape(1, -1))
    if dtype is not None:
        p = tuple(q.astype(dtype) for q in p)
    return p


def _pick_batch_tile(B):
    # Mem-bound kernel: bigger tiles amortize the ~0.35us/grid-step overhead (~85% of
    # HBM roofline at 512 rows), but keep >=2 grid steps when possible so v7x's two
    # TensorCores both get work under dimension_semantics=("parallel",).
    for t in (1024, 512, 256, 128):
        if B > t:
            return t
    return max(8, -(-B // 8) * 8)  # tiny batch: a single 8-aligned tile


def _vmem_capacity_bytes():
    try:
        info = pltpu.get_tpu_info()
        for name in ("vmem_capacity_bytes", "vmem_bytes", "vmem_size_bytes"):
            v = getattr(info, name, None)
            if v:
                return int(v)
    except Exception:
        pass
    return 64 << 20  # conservative (v7x-sized) fallback if detection fails


# Probed once at lowering time: does this JAX build accept pl.Buffered(1) (single
# buffering) for the resident weight/bias blocks?
_SINGLE_BUFFER_WEIGHTS = None


def autoencoder_forward(x, w1_t, b1_r, w2_t, b2_r, *, batch_tile=None):
    """x: [B, E]; w1_t: [E, H]; b1_r: [1, H]; w2_t: [H, E]; b2_r: [1, E]."""
    global _SINGLE_BUFFER_WEIGHTS

    B, E = x.shape
    H = w1_t.shape[1]
    assert w1_t.shape == (E, H) and w2_t.shape == (H, E)
    assert b1_r.shape == (1, H) and b2_r.shape == (1, E)
    assert E % 128 == 0 and H % 128 == 0, "keep MXU-facing dims 128-aligned"

    if batch_tile is None:
        batch_tile = _pick_batch_tile(B)
    assert batch_tile % 8 == 0, "batch tile must be sublane (8) aligned"

    # No padding / slicing: Pallas clips the partial trailing block itself, so the only
    # HBM traffic is the kernel's own reads/writes.
    n_tiles = pl.cdiv(B, batch_tile)

    itemsize = jnp.dtype(x.dtype).itemsize
    stage_intermediate = batch_tile * H * itemsize > (128 << 10)
    kernel = functools.partial(_autoencoder_kernel,
                               stage_intermediate=stage_intermediate)
    scratch = ([pltpu.VMEM((batch_tile, H), x.dtype)]
               if stage_intermediate else [])

    cost = pl.CostEstimate(
        flops=4 * B * E * H,                                     # two matmuls, 2*M*N*K each
        transcendentals=0,
        bytes_accessed=(2 * B * E + 2 * E * H + H + E) * itemsize,
    )

    vmem_cap = _vmem_capacity_bytes()

    def build(single_buffer_weights):
        w_bufs = 1 if single_buffer_weights else 2
        vmem_need = (
            2 * 2 * batch_tile * E * itemsize           # x + out tiles, double-buffered
            + w_bufs * 2 * E * H * itemsize             # W1 + W2 (resident)
            + w_bufs * (H + E) * itemsize               # biases
            + (batch_tile * H * itemsize if stage_intermediate else 0)
        )
        vmem_limit = min(max(int(vmem_need * 1.25) + (4 << 20), 32 << 20),
                         int(0.85 * vmem_cap))
        w_kwargs = ({"pipeline_mode": pl.Buffered(1)}
                    if single_buffer_weights else {})
        # NOTE(v5e): if profiling shows exposed DMA, deepen the x input buffering with
        # pipeline_mode=pl.Buffered(3) on the x BlockSpec.
        return pl.pallas_call(
            kernel,
            out_shape=jax.ShapeDtypeStruct((B, E), x.dtype),
            grid_spec=pltpu.PrefetchScalarGridSpec(
                num_scalar_prefetch=0,
                grid=(n_tiles,),
                in_specs=[
                    pl.BlockSpec((batch_tile, E), lambda i: (i, 0)),    # x tile
                    pl.BlockSpec((E, H), lambda i: (0, 0), **w_kwargs),  # W1^T (resident)
                    pl.BlockSpec((1, H), lambda i: (0, 0), **w_kwargs),  # b1
                    pl.BlockSpec((H, E), lambda i: (0, 0), **w_kwargs),  # W2^T (resident)
                    pl.BlockSpec((1, E), lambda i: (0, 0), **w_kwargs),  # b2
                ],
                out_specs=pl.BlockSpec((batch_tile, E), lambda i: (i, 0)),
                scratch_shapes=scratch,
            ),
            compiler_params=pltpu.CompilerParams(
                dimension_semantics=("parallel",),
                vmem_limit_bytes=vmem_limit,
            ),
            cost_estimate=cost,
        )

    if _SINGLE_BUFFER_WEIGHTS is None:
        # Probe at lowering time only (narrow scope); the real call is never wrapped in
        # try/except, so genuine runtime failures are not silently retried.
        try:
            jax.jit(build(True)).lower(x, w1_t, b1_r, w2_t, b2_r)
            _SINGLE_BUFFER_WEIGHTS = True
        except Exception:
            _SINGLE_BUFFER_WEIGHTS = False

    fn = build(_SINGLE_BUFFER_WEIGHTS)
    return fn(x, w1_t, b1_r, w2_t, b2_r)


if __name__ == "__main__":
    # Small shapes consistent with the module structure (full-size module uses
    # embedding_dim = 1024 * n_modalities, hidden_dim = 1024).
    n_modalities = 2
    embedding_dim = 128 * n_modalities   # 256
    hidden_dim = 128
    batch = 400                          # deliberately NOT a multiple of the batch tile

    key = jax.random.PRNGKey(0)
    kx, k1, k2, k3, k4 = jax.random.split(key, 5)

    x = jax.random.normal(kx, (batch, embedding_dim), dtype=jnp.float32)
    # PyTorch nn.Linear parameter shapes: W [out, in], b [out].
    w1 = jax.random.normal(k1, (hidden_dim, embedding_dim), jnp.float32) * 0.02
    b1 = jax.random.normal(k2, (hidden_dim,), jnp.float32) * 0.02
    w2 = jax.random.normal(k3, (embedding_dim, hidden_dim), jnp.float32) * 0.02
    b2 = jax.random.normal(k4, (embedding_dim,), jnp.float32) * 0.02

    # Plain-JAX reference (PyTorch layout) to validate semantics.
    enc_ref = jnp.maximum(x @ w1.T + b1, 0.0)
    dec_ref = jnp.maximum(enc_ref @ w2.T + b2, 0.0)

    # f32 run: tight correctness check.
    params_f32 = prepare_params(w1, b1, w2, b2)
    out = jax.block_until_ready(autoencoder_forward(x, *params_f32))
    assert out.shape == (batch, embedding_dim)
    assert jnp.allclose(out, dec_ref, atol=1e-4, rtol=1e-4), float(
        jnp.max(jnp.abs(out - dec_ref)))

    # bf16 run (the recommended v6e/v7x configuration): half the HBM traffic, native
    # MXU rate; looser tolerance since x, weights and the intermediate are bf16.
    params_bf16 = prepare_params(w1, b1, w2, b2, dtype=jnp.bfloat16)
    out_bf16 = jax.block_until_ready(
        autoencoder_forward(x.astype(jnp.bfloat16), *params_bf16))
    assert out_bf16.shape == (batch, embedding_dim)
    assert jnp.allclose(out_bf16.astype(jnp.float32), dec_ref, atol=5e-2, rtol=5e-2)

    print("KERNEL_OK")
</pallas_src>

<mosaic_0001>
module attributes {stable_mosaic.version = 11 : i64} {
  func.func @_autoencoder_kernel(%arg0: i32, %arg1: memref<256x256xf32, #tpu.memory_space<vmem>>, %arg2: memref<256x128xf32, #tpu.memory_space<vmem>>, %arg3: memref<1x128xf32, #tpu.memory_space<vmem>>, %arg4: memref<128x256xf32, #tpu.memory_space<vmem>>, %arg5: memref<1x256xf32, #tpu.memory_space<vmem>>, %arg6: memref<256x256xf32, #tpu.memory_space<vmem>>) attributes {dimension_semantics = [#tpu.dimension_semantics<parallel>], iteration_bounds = array<i64: 2>, scalar_prefetch = 0 : i64, scratch_operands = 0 : i64, tpu.core_type = #tpu.core_type<tc>, window_params = [{transform_indices = @transform_0, window_bounds = array<i64: 256, 256>}, {pipeline_mode = #tpu.pipeline_mode<synchronous>, transform_indices = @transform_1, window_bounds = array<i64: 256, 128>}, {pipeline_mode = #tpu.pipeline_mode<synchronous>, transform_indices = @transform_2, window_bounds = array<i64: 1, 128>}, {pipeline_mode = #tpu.pipeline_mode<synchronous>, transform_indices = @transform_3, window_bounds = array<i64: 128, 256>}, {pipeline_mode = #tpu.pipeline_mode<synchronous>, transform_indices = @transform_4, window_bounds = array<i64: 1, 256>}, {transform_indices = @transform_5, window_bounds = array<i64: 256, 256>}]} {
    %c0 = arith.constant 0 : index
    %c0_0 = arith.constant 0 : index
    %0 = vector.load %arg1[%c0, %c0_0] : memref<256x256xf32, #tpu.memory_space<vmem>>, vector<256x256xf32>
    %c0_1 = arith.constant 0 : index
    %c0_2 = arith.constant 0 : index
    %1 = vector.load %arg2[%c0_1, %c0_2] : memref<256x128xf32, #tpu.memory_space<vmem>>, vector<256x128xf32>
    %cst = arith.constant dense<0.000000e+00> : vector<256x128xf32>
    %2 = tpu.matmul %0, %1, %cst {dimension_numbers = #tpu.dot_dimension_numbers<[1], [0], [0], [1], [0, 0, 1, 1], [], []>} : vector<256x256xf32>, vector<256x128xf32>, vector<256x128xf32> -> vector<256x128xf32>
    %c0_3 = arith.constant 0 : index
    %c0_4 = arith.constant 0 : index
    %3 = vector.load %arg3[%c0_3, %c0_4] : memref<1x128xf32, #tpu.memory_space<vmem>>, vector<1x128xf32>
    %4 = vector.broadcast %3 : vector<1x128xf32> to vector<256x128xf32>
    %5 = arith.addf %2, %4 : vector<256x128xf32>
    %cst_5 = arith.constant 0.000000e+00 : f32
    %6 = vector.broadcast %cst_5 : f32 to vector<256x128xf32>
    %7 = arith.maximumf %5, %6 : vector<256x128xf32>
    %c0_6 = arith.constant 0 : index
    %c0_7 = arith.constant 0 : index
    %8 = vector.load %arg4[%c0_6, %c0_7] : memref<128x256xf32, #tpu.memory_space<vmem>>, vector<128x256xf32>
    %cst_8 = arith.constant dense<0.000000e+00> : vector<256x256xf32>
    %9 = tpu.matmul %7, %8, %cst_8 {dimension_numbers = #tpu.dot_dimension_numbers<[1], [0], [0], [1], [0, 0, 1, 1], [], []>} : vector<256x128xf32>, vector<128x256xf32>, vector<256x256xf32> -> vector<256x256xf32>
    %c0_9 = arith.constant 0 : index
    %c0_10 = arith.constant 0 : index
    %10 = vector.load %arg5[%c0_9, %c0_10] : memref<1x256xf32, #tpu.memory_space<vmem>>, vector<1x256xf32>
    %11 = vector.broadcast %10 : vector<1x256xf32> to vector<256x256xf32>
    %12 = arith.addf %9, %11 : vector<256x256xf32>
    %cst_11 = arith.constant 0.000000e+00 : f32
    %13 = vector.broadcast %cst_11 : f32 to vector<256x256xf32>
    %14 = arith.maximumf %12, %13 : vector<256x256xf32>
    %c0_12 = arith.constant 0 : index
    %c0_13 = arith.constant 0 : index
    %15 = vector.load %arg6[%c0_12, %c0_13] : memref<256x256xf32, #tpu.memory_space<vmem>>, vector<256x256xf32>
    tpu.vector_store %arg6[%c0_12, %c0_13], %14 {strides = array<i32>} : memref<256x256xf32, #tpu.memory_space<vmem>>, vector<256x256xf32>,
    return
  }
  func.func @transform_0(%arg0: i32) -> (i32, i32) {
    %c0_i32 = arith.constant 0 : i32
    %c0_i32_0 = arith.constant 0 : i32
    return %arg0, %c0_i32 : i32, i32
  }
  func.func @transform_1(%arg0: i32) -> (i32, i32) {
    %c0_i32 = arith.constant 0 : i32
    %c0_i32_0 = arith.constant 0 : i32
    %c0_i32_1 = arith.constant 0 : i32
    return %c0_i32, %c0_i32_0 : i32, i32
  }
  func.func @transform_2(%arg0: i32) -> (i32, i32) {
    %c0_i32 = arith.constant 0 : i32
    %c0_i32_0 = arith.constant 0 : i32
    %c0_i32_1 = arith.constant 0 : i32
    return %c0_i32, %c0_i32_0 : i32, i32
  }
  func.func @transform_3(%arg0: i32) -> (i32, i32) {
    %c0_i32 = arith.constant 0 : i32
    %c0_i32_0 = arith.constant 0 : i32
    %c0_i32_1 = arith.constant 0 : i32
    return %c0_i32, %c0_i32_0 : i32, i32
  }
  func.func @transform_4(%arg0: i32) -> (i32, i32) {
    %c0_i32 = arith.constant 0 : i32
    %c0_i32_0 = arith.constant 0 : i32
    %c0_i32_1 = arith.constant 0 : i32
    return %c0_i32, %c0_i32_0 : i32, i32
  }
  func.func @transform_5(%arg0: i32) -> (i32, i32) {
    %c0_i32 = arith.constant 0 : i32
    %c0_i32_0 = arith.constant 0 : i32
    return %arg0, %c0_i32 : i32, i32
  }
}

</mosaic_0001>

<llo_original>
// kernel: tpu_custom_call.1
$region0: #{tpu_custom_call.1}
  #allocation0 [shape = 'u32[]', space=smem, size = 0x4, offset = 0x4, fixed_abs, tag = 'smem constant byte address 0x4 - core index']
  #allocation1 [shape = 'u32[144,128]{1,0:T(1,128)}', space=vmem, size = 0x12000, scoped, tag = 'internal scratch']
  %s0 = inlined_call_operand.hbm [shape: f32[400,256], index: 0, kind: input, shape index: {}]
  %s1 = inlined_call_operand.hbm [shape: f32[256,128], index: 1, kind: input, shape index: {}]
  %s2 = inlined_call_operand.vmem [shape: f32[1,128], index: 2, kind: input, shape index: {}]
  %s3 = inlined_call_operand.hbm [shape: f32[128,256], index: 3, kind: input, shape index: {}]
  %s4 = inlined_call_operand.vmem [shape: f32[1,256], index: 4, kind: input, shape index: {}]
  %s5 = inlined_call_operand.hbm [shape: f32[400,256], index: 5, kind: output, shape index: {}]
  %s6 = sld [smem:[#allocation0]]
  $region65: #{tpu_custom_call.1} parent=0
    _
  %s8 = ssub.s32 1, %s6
  %s9 = scalar_select 0, %s8, %s6
  $region1: #{tpu_custom_call.1} parent=0
    #allocation2 [shape = 'u8[524288]{0}', space=vmem, size = 0x80000, scoped, tag = 'input window, operand 0']
    #allocation3 [shape = 's32[2]{0}', space=sflag, size = 0x8, scoped, tag = 'scoped memory for tpu_custom_call.1']
    #allocation4 [shape = 's32[2]{0}', space=sflag, size = 0x8, scoped, tag = 'scoped memory for tpu_custom_call.1']
    #allocation5 [shape = 'u8[131072]{0}', space=vmem, size = 0x20000, scoped, tag = 'input window, operand 1, single buffered']
    #allocation6 [shape = 's32[1]{0}', space=sflag, size = 0x4, scoped, tag = 'scoped memory for tpu_custom_call.1']
    #allocation7 [shape = 'u8[131072]{0}', space=vmem, size = 0x20000, scoped, tag = 'input window, operand 3, single buffered']
    #allocation8 [shape = 'u8[524288]{0}', space=vmem, size = 0x80000, scoped, tag = 'output window, operand 0']
    %10 = vsyncpa [#allocation3], 0
    %s11 = scalar_lea.sflag [#allocation3], 1
    %12 = vsyncpa %s11, 0
    %13 = vsyncpa [#allocation6], 0
    %14 = vsyncpa [#allocation4], 0
    %s15 = scalar_lea.sflag [#allocation4], 1
    %16 = vsyncpa %s15, 0
    loop: start=0, step=1, limit=4
    $region2: #{tpu_custom_call.1} parent=1 // loop_pre_header
      _
    $region3: #{tpu_custom_call.1} parent=1 // loop_header
      %s18 = sphi 0, %s22
      %p19 = scmp.ge.s32.totalorder %s18, 4
      %s28 = sphi 0, %s30
      %s31 = sphi 0, %s28
      %s32 = sphi 0, %s31
      %s48 = sphi 0, %s32
      %s52 = sphi 0, %s52
      %s54 = sphi 0, %s52
      %s55 = sphi 0, %s54
      %s69 = sphi 0, %s55
      %s73 = sphi 0, %s73
      %s75 = sphi 0, %s73
      %s76 = sphi 0, %s75
      %s90 = sphi 0, %s76
      %s94 = sphi 0, %s94
      %s96 = sphi 0, %s94
      %s97 = sphi 0, %s96
      %s111 = sphi 0, %s97
      %s115 = sphi 0, %s115
      %s117 = sphi 0, %s115
      %s118 = sphi 0, %s117
      %s132 = sphi 0, %s118
      %s138 = sphi 0, %s140
      %s141 = sphi 0, %s138
      %s142 = sphi 0, %s141
      %s158 = sphi 0, %s142
    $region4: #{tpu_custom_call.1} parent=1 // loop_header_branch
      %21 = sbr.rel (%p19) target = $region8
    $region5: #{tpu_custom_call.1} parent=1 // loop_body
      %s23 = ssub.s32 %s18, 1
      %s24 = ssub.s32 %s18, 2
      %s25 = sadd.s32 %s18, 1
      %s26 = ssub.s32 %s18, %s25
      %p27 = scmp.eq.s32.totalorder %s26, 0
      %s29 = sadd.s32 %s28, 1
      %s30 = scalar_select %p27, %s28, %s29
      %p33 = pneg %p27
      %p34 = scmp.eq.s32.totalorder %s18, 1
      %p35 = por %p33, %p34
      %p36 = scmp.ne.s32.totalorder %s28, %s31
      %p37 = scmp.eq.s32.totalorder %s18, 0
      %p38 = por %p36, %p37
      %p39 = scmp.ne.s32.totalorder %s28, %s31
      %p40 = scmp.eq.s32.totalorder %s23, 1
      %p41 = por %p39, %p40
      %p42 = scmp.ne.s32.totalorder %s31, %s32
      %p43 = scmp.eq.s32.totalorder %s23, 0
      %p44 = por %p42, %p43
      %p45 = scmp.ne.s32.totalorder %s31, %s32
      %p46 = scmp.eq.s32.totalorder %s24, 1
      %p47 = por %p45, %p46
      %p49 = scmp.ne.s32.totalorder %s32, %s48
      %p50 = scmp.eq.s32.totalorder %s24, 0
      %p51 = por %p49, %p50
      %s53 = sadd.s32 %s52, 1
      %p56 = scmp.eq.s32.totalorder %s18, 1
      %p57 = scmp.ne.s32.totalorder %s52, %s54
      %p58 = scmp.eq.s32.totalorder %s18, 0
      %p59 = por %p57, %p58
      %p60 = scmp.ne.s32.totalorder %s52, %s54
      %p61 = scmp.eq.s32.totalorder %s23, 1
      %p62 = por %p60, %p61
      %p63 = scmp.ne.s32.totalorder %s54, %s55
      %p64 = scmp.eq.s32.totalorder %s23, 0
      %p65 = por %p63, %p64
      %p66 = scmp.ne.s32.totalorder %s54, %s55
      %p67 = scmp.eq.s32.totalorder %s24, 1
      %p68 = por %p66, %p67
      %p70 = scmp.ne.s32.totalorder %s55, %s69
      %p71 = scmp.eq.s32.totalorder %s24, 0
      %p72 = por %p70, %p71
      %s74 = sadd.s32 %s73, 1
      %p77 = scmp.eq.s32.totalorder %s18, 1
      %p78 = scmp.ne.s32.totalorder %s73, %s75
      %p79 = scmp.eq.s32.totalorder %s18, 0
      %p80 = por %p78, %p79
      %p81 = scmp.ne.s32.totalorder %s73, %s75
      %p82 = scmp.eq.s32.totalorder %s23, 1
      %p83 = por %p81, %p82
      %p84 = scmp.ne.s32.totalorder %s75, %s76
      %p85 = scmp.eq.s32.totalorder %s23, 0
      %p86 = por %p84, %p85
      %p87 = scmp.ne.s32.totalorder %s75, %s76
      %p88 = scmp.eq.s32.totalorder %s24, 1
      %p89 = por %p87, %p88
      %p91 = scmp.ne.s32.totalorder %s76, %s90
      %p92 = scmp.eq.s32.totalorder %s24, 0
      %p93 = por %p91, %p92
      %s95 = sadd.s32 %s94, 1
      %p98 = scmp.eq.s32.totalorder %s18, 1
      %p99 = scmp.ne.s32.totalorder %s94, %s96
      %p100 = scmp.eq.s32.totalorder %s18, 0
      %p101 = por %p99, %p100
      %p102 = scmp.ne.s32.totalorder %s94, %s96
      %p103 = scmp.eq.s32.totalorder %s23, 1
      %p104 = por %p102, %p103
      %p105 = scmp.ne.s32.totalorder %s96, %s97
      %p106 = scmp.eq.s32.totalorder %s23, 0
      %p107 = por %p105, %p106
      %p108 = scmp.ne.s32.totalorder %s96, %s97
      %p109 = scmp.eq.s32.totalorder %s24, 1
      %p110 = por %p108, %p109
      %p112 = scmp.ne.s32.totalorder %s97, %s111
      %p113 = scmp.eq.s32.totalorder %s24, 0
      %p114 = por %p112, %p113
      %s116 = sadd.s32 %s115, 1
      %p119 = scmp.eq.s32.totalorder %s18, 1
      %p120 = scmp.ne.s32.totalorder %s115, %s117
      %p121 = scmp.eq.s32.totalorder %s18, 0
      %p122 = por %p120, %p121
      %p123 = scmp.ne.s32.totalorder %s115, %s117
      %p124 = scmp.eq.s32.totalorder %s23, 1
      %p125 = por %p123, %p124
      %p126 = scmp.ne.s32.totalorder %s117, %s118
      %p127 = scmp.eq.s32.totalorder %s23, 0
      %p128 = por %p126, %p127
      %p129 = scmp.ne.s32.totalorder %s117, %s118
      %p130 = scmp.eq.s32.totalorder %s24, 1
      %p131 = por %p129, %p130
      %p133 = scmp.ne.s32.totalorder %s118, %s132
      %p134 = scmp.eq.s32.totalorder %s24, 0
      %p135 = por %p133, %p134
      %s136 = ssub.s32 %s18, %s25
      %p137 = scmp.eq.s32.totalorder %s136, 0
      %s139 = sadd.s32 %s138, 1
      %s140 = scalar_select %p137, %s138, %s139
      %p143 = pneg %p137
      %p144 = scmp.eq.s32.totalorder %s18, 1
      %p145 = por %p143, %p144
      %p146 = scmp.ne.s32.totalorder %s138, %s141
      %p147 = scmp.eq.s32.totalorder %s18, 0
      %p148 = por %p146, %p147
      %p149 = scmp.ne.s32.totalorder %s138, %s141
      %p150 = scmp.eq.s32.totalorder %s23, 1
      %p151 = por %p149, %p150
      %p152 = scmp.ne.s32.totalorder %s141, %s142
      %p153 = scmp.eq.s32.totalorder %s23, 0
      %p154 = por %p152, %p153
      %p155 = scmp.ne.s32.totalorder %s141, %s142
      %p156 = scmp.eq.s32.totalorder %s24, 1
      %p157 = por %p155, %p156
      %p159 = scmp.ne.s32.totalorder %s142, %s158
      %p160 = scmp.eq.s32.totalorder %s24, 0
      %p161 = por %p159, %p160
      %p162 = scmp.le.s32.totalorder 1, %s18
      %p163 = scmp.lt.s32.totalorder %s18, 3
      %p164 = pnand %p162, %p163
      %p165 = pneg %p164
      // Predicated region
      $region9: #{tpu_custom_call.1} parent=5 // pred_check
        _
      $region10: #{tpu_custom_call.1} parent=5 // pred_check_branch
        %167 = sbr.rel (%p164) target = $region12
      $region11: #{tpu_custom_call.1} parent=5 // pred_region
        %s168 = ssub.s32 %s18, 1
        // Predicated region
        $region13: #{tpu_custom_call.1} parent=11 // pred_check
          %p169 = pneg %p65
        $region14: #{tpu_custom_call.1} parent=11 // pred_check_branch
          %171 = sbr.rel (%p169) target = $region16
        $region15: #{tpu_custom_call.1} parent=11 // pred_region
          %s173 = ssub.s32 4096, 4096
          %174 = vsyncadd [#allocation6], %s173
          %s175 = sshll.u32 [#allocation5], 4
          %s176 = int_to_ptr.vmem [resolvable:$true] %s175
          %181 = dma.hbm_to_vmem [thread:$0]  %s1, 4096, %s176, [#allocation6], 128, 128, 8
        $region16: #{tpu_custom_call.1} parent=11 // pred_fallthru
          _
        // Predicated region
        $region17: #{tpu_custom_call.1} parent=11 // pred_check
          %p182 = pneg %p86
        $region18: #{tpu_custom_call.1} parent=11 // pred_check_branch
          %184 = sbr.rel (%p182) target = $region20
        $region19: #{tpu_custom_call.1} parent=11 // pred_region
          _
        $region20: #{tpu_custom_call.1} parent=11 // pred_fallthru
          _
        // Predicated region
        $region21: #{tpu_custom_call.1} parent=11 // pred_check
          %p185 = pneg %p107
        $region22: #{tpu_custom_call.1} parent=11 // pred_check_branch
          %187 = sbr.rel (%p185) target = $region24
        $region23: #{tpu_custom_call.1} parent=11 // pred_region
          %s189 = ssub.s32 4096, 4096
          %190 = vsyncadd [#allocation6], %s189
          %s191 = sshll.u32 [#allocation7], 4
          %s192 = int_to_ptr.vmem [resolvable:$true] %s191
          %197 = dma.hbm_to_vmem [thread:$0]  %s3, 4096, %s192, [#allocation6], 256, 256, 16
        $region24: #{tpu_custom_call.1} parent=11 // pred_fallthru
          _
        // Predicated region
        $region25: #{tpu_custom_call.1} parent=11 // pred_check
          %p198 = pneg %p128
        $region26: #{tpu_custom_call.1} parent=11 // pred_check_branch
          %200 = sbr.rel (%p198) target = $region28
        $region27: #{tpu_custom_call.1} parent=11 // pred_region
          _
        $region28: #{tpu_custom_call.1} parent=11 // pred_fallthru
          _
      $region12: #{tpu_custom_call.1} parent=5 // pred_fallthru
        _
      %p201 = scmp.lt.s32.totalorder %s18, 2
      // Predicated region
      $region29: #{tpu_custom_call.1} parent=5 // pred_check
        %p202 = pneg %p201
      $region30: #{tpu_custom_call.1} parent=5 // pred_check_branch
        %204 = sbr.rel (%p202) target = $region32
      $region31: #{tpu_custom_call.1} parent=5 // pred_region
        // Predicated region
        $region33: #{tpu_custom_call.1} parent=31 // pred_check
          %p205 = pneg %p38
        $region34: #{tpu_custom_call.1} parent=31 // pred_check_branch
          %207 = sbr.rel (%p205) target = $region36
        $region35: #{tpu_custom_call.1} parent=31 // pred_region
          %s208 = sand.u32 %s28, 1
          %s209 = scalar_lea.sflag [#allocation3], %s208
          %s210 = sand.u32 %s28, 1
          %s211 = smul.addr %s210, 512
          %s212 = scalar_lea.vmem [#allocation2], %s211
          %s213 = smul.u32 32, %s18
          %s214 = ssub.s32 50, %s213
          %p215 = scmp.lt.s32.totalorder %s214, 32
          %s216 = scalar_select %p215, %s214, 32
          %s217 = smul.u32 128, %s216
          %s218 = smul.u32 %s217, 2
          %s220 = ssub.s32 8192, %s218
          %221 = vsyncadd %s209, %s220
          %p222 = scmp.ne.s32.totalorder 0, %s218
          %s223 = smul.addr %s213, 2
          %s224 = smul.addr %s223, 128
          %s225 = scalar_lea.hbm %s0, %s224
          %s226 = smul.u32 16, %s216
          %s227 = sshll.u32 %s212, 4
          %s228 = int_to_ptr.vmem [resolvable:$true] %s227
          %s229 = sshll.u32 %s226, 4
          %233 = dma.hbm_to_vmem [thread:$0]  (%p222), %s225, %s229, %s228, %s209, 256, 256, 16
        $region36: #{tpu_custom_call.1} parent=31 // pred_fallthru
          _
      $region32: #{tpu_custom_call.1} parent=5 // pred_fallthru
        _
      %p234 = scmp.le.s32.totalorder 1, %s18
      %p235 = scmp.lt.s32.totalorder %s18, 3
      %p236 = pnand %p234, %p235
      %p237 = pneg %p236
      // Predicated region
      $region37: #{tpu_custom_call.1} parent=5 // pred_check
        _
      $region38: #{tpu_custom_call.1} parent=5 // pred_check_branch
        %239 = sbr.rel (%p236) target = $region40
      $region39: #{tpu_custom_call.1} parent=5 // pred_region
        %s240 = ssub.s32 %s18, 1
        %s241 = sand.u32 %s31, 1
        %s242 = scalar_lea.sflag [#allocation3], %s241
        %s243 = sand.u32 %s31, 1
        %s244 = smul.addr %s243, 512
        %s245 = scalar_lea.vmem [#allocation2], %s244
        // Predicated region
        $region41: #{tpu_custom_call.1} parent=39 // pred_check
          %p246 = pneg %p44
        $region42: #{tpu_custom_call.1} parent=39 // pred_check_branch
          %248 = sbr.rel (%p246) target = $region44
        $region43: #{tpu_custom_call.1} parent=39 // pred_region
          %249 = dma.done %s242, 8192
        $region44: #{tpu_custom_call.1} parent=39 // pred_fallthru
          _
        // Predicated region
        $region45: #{tpu_custom_call.1} parent=39 // pred_check
          %p250 = pneg %p65
        $region46: #{tpu_custom_call.1} parent=39 // pred_check_branch
          %252 = sbr.rel (%p250) target = $region48
        $region47: #{tpu_custom_call.1} parent=39 // pred_region
          %253 = dma.done [#allocation6], 4096
        $region48: #{tpu_custom_call.1} parent=39 // pred_fallthru
          _
        // Predicated region
        $region49: #{tpu_custom_call.1} parent=39 // pred_check
          %p254 = pneg %p107
        $region50: #{tpu_custom_call.1} parent=39 // pred_check_branch
          %256 = sbr.rel (%p254) target = $region52
        $region51: #{tpu_custom_call.1} parent=39 // pred_region
          %257 = dma.done [#allocation6], 4096
        $region52: #{tpu_custom_call.1} parent=39 // pred_fallthru
          _
        %s258 = sand.u32 %s31, 1
        %s259 = scalar_lea.sflag [#allocation3], %s258
        %s260 = sand.u32 %s31, 1
        %s261 = smul.addr %s260, 512
        %s262 = scalar_lea.vmem [#allocation2], %s261
        %p263 = pneg %p44
        %p264 = pneg %p41
        %p265 = pneg %p65
        %p266 = pneg %p62
        %p267 = pneg %p86
        %p268 = pneg %p83
        %p269 = pneg %p107
        %p270 = pneg %p104
        %p271 = pneg %p128
        %p272 = pneg %p125
        %p273 = pneg %p154
        %p274 = pneg %p151
        %s275 = sand.u32 %s141, 1
        %s276 = scalar_lea.sflag [#allocation4], %s275
        %s277 = sand.u32 %s141, 1
        %s278 = smul.addr %s277, 512
        %s279 = scalar_lea.vmem [#allocation8], %s278
        %s280 = smul.u32 32, %s23
        %s281 = ssub.s32 50, %s280
        %p282 = scmp.lt.s32.totalorder %s281, 32
        %s283 = scalar_select %p282, %s281, 32
        %s284 = smul.u32 128, %s283
        %s285 = smul.u32 %s284, 2
        %s286 = smul.u32 32, %s23
        %s287 = ssub.s32 50, %s286
        %p288 = scmp.lt.s32.totalorder %s287, 32
        %s289 = scalar_select %p288, %s287, 32
        %s290 = smul.u32 128, %s289
        %s291 = smul.u32 %s290, 2
        %v292 = vld [vmem:[%s245] sm:$0xff]
        %v293 = vld [vmem:[%s245 + $0x8] sm:$0xff]
        %v294 = vld [vmem:[%s245 + $0x10] sm:$0xff]
        %v295 = vld [vmem:[%s245 + $0x18] sm:$0xff]
        %v296 = vld [vmem:[%s245 + $0x20] sm:$0xff]
        %v297 = vld [vmem:[%s245 + $0x28] sm:$0xff]
        %v298 = vld [vmem:[%s245 + $0x30] sm:$0xff]
        %v299 = vld [vmem:[%s245 + $0x38] sm:$0xff]
        %v300 = vld [vmem:[%s245 + $0x40] sm:$0xff]
        %v301 = vld [vmem:[%s245 + $0x48] sm:$0xff]
        %v302 = vld [vmem:[%s245 + $0x50] sm:$0xff]
        %v303 = vld [vmem:[%s245 + $0x58] sm:$0xff]
        %v304 = vld [vmem:[%s245 + $0x60] sm:$0xff]
        %v305 = vld [vmem:[%s245 + $0x68] sm:$0xff]
        %v306 = vld [vmem:[%s245 + $0x70] sm:$0xff]
        %v307 = vld [vmem:[%s245 + $0x78] sm:$0xff]
        %v308 = vld [vmem:[%s245 + $0x80] sm:$0xff]
        %v309 = vld [vmem:[%s245 + $0x88] sm:$0xff]
        %v310 = vld [vmem:[%s245 + $0x90] sm:$0xff]
        %v311 = vld [vmem:[%s245 + $0x98] sm:$0xff]
        %v312 = vld [vmem:[%s245 + $0xa0] sm:$0xff]
        %v313 = vld [vmem:[%s245 + $0xa8] sm:$0xff]
        %v314 = vld [vmem:[%s245 + $0xb0] sm:$0xff]
        %v315 = vld [vmem:[%s245 + $0xb8] sm:$0xff]
        %v316 = vld [vmem:[%s245 + $0xc0] sm:$0xff]
        %v317 = vld [vmem:[%s245 + $0xc8] sm:$0xff]
        %v318 = vld [vmem:[%s245 + $0xd0] sm:$0xff]
        %v319 = vld [vmem:[%s245 + $0xd8] sm:$0xff]
        %v320 = vld [vmem:[%s245 + $0xe0] sm:$0xff]
        %v321 = vld [vmem:[%s245 + $0xe8] sm:$0xff]
        %v322 = vld [vmem:[%s245 + $0xf0] sm:$0xff]
        %v323 = vld [vmem:[%s245 + $0xf8] sm:$0xff]
        %v324 = vld [vmem:[%s245 + $0x100] sm:$0xff]
        %v325 = vld [vmem:[%s245 + $0x108] sm:$0xff]
        %v326 = vld [vmem:[%s245 + $0x110] sm:$0xff]
        %v327 = vld [vmem:[%s245 + $0x118] sm:$0xff]
        %v328 = vld [vmem:[%s245 + $0x120] sm:$0xff]
        %v329 = vld [vmem:[%s245 + $0x128] sm:$0xff]
        %v330 = vld [vmem:[%s245 + $0x130] sm:$0xff]
        %v331 = vld [vmem:[%s245 + $0x138] sm:$0xff]
        %v332 = vld [vmem:[%s245 + $0x140] sm:$0xff]
        %v333 = vld [vmem:[%s245 + $0x148] sm:$0xff]
        %v334 = vld [vmem:[%s245 + $0x150] sm:$0xff]
        %v335 = vld [vmem:[%s245 + $0x158] sm:$0xff]
        %v336 = vld [vmem:[%s245 + $0x160] sm:$0xff]
        %v337 = vld [vmem:[%s245 + $0x168] sm:$0xff]
        %v338 = vld [vmem:[%s245 + $0x170] sm:$0xff]
        %v339 = vld [vmem:[%s245 + $0x178] sm:$0xff]
        %v340 = vld [vmem:[%s245 + $0x180] sm:$0xff]
        %v341 = vld [vmem:[%s245 + $0x188] sm:$0xff]
        %v342 = vld [vmem:[%s245 + $0x190] sm:$0xff]
        %v343 = vld [vmem:[%s245 + $0x198] sm:$0xff]
        %v344 = vld [vmem:[%s245 + $0x1a0] sm:$0xff]
        %v345 = vld [vmem:[%s245 + $0x1a8] sm:$0xff]
        %v346 = vld [vmem:[%s245 + $0x1b0] sm:$0xff]
        %v347 = vld [vmem:[%s245 + $0x1b8] sm:$0xff]
        %v348 = vld [vmem:[%s245 + $0x1c0] sm:$0xff]
        %v349 = vld [vmem:[%s245 + $0x1c8] sm:$0xff]
        %v350 = vld [vmem:[%s245 + $0x1d0] sm:$0xff]
        %v351 = vld [vmem:[%s245 + $0x1d8] sm:$0xff]
        %v352 = vld [vmem:[%s245 + $0x1e0] sm:$0xff]
        %v353 = vld [vmem:[%s245 + $0x1e8] sm:$0xff]
        %v354 = vld [vmem:[%s245 + $0x1f0] sm:$0xff]
        %v355 = vld [vmem:[%s245 + $0x1f8] sm:$0xff]
        %v356 = vld [vmem:[#allocation5] sm:$0xff]
        %v357 = vld [vmem:[#allocation5 + $0x8] sm:$0xff]
        %v358 = vld [vmem:[#allocation5 + $0x10] sm:$0xff]
        %v359 = vld [vmem:[#allocation5 + $0x18] sm:$0xff]
        %v360 = vld [vmem:[#allocation5 + $0x20] sm:$0xff]
        %v361 = vld [vmem:[#allocation5 + $0x28] sm:$0xff]
        %v362 = vld [vmem:[#allocation5 + $0x30] sm:$0xff]
        %v363 = vld [vmem:[#allocation5 + $0x38] sm:$0xff]
        %v364 = vld [vmem:[#allocation5 + $0x40] sm:$0xff]
        %v365 = vld [vmem:[#allocation5 + $0x48] sm:$0xff]
        %v366 = vld [vmem:[#allocation5 + $0x50] sm:$0xff]
        %v367 = vld [vmem:[#allocation5 + $0x58] sm:$0xff]
        %v368 = vld [vmem:[#allocation5 + $0x60] sm:$0xff]
        %v369 = vld [vmem:[#allocation5 + $0x68] sm:$0xff]
        %v370 = vld [vmem:[#allocation5 + $0x70] sm:$0xff]
        %v371 = vld [vmem:[#allocation5 + $0x78] sm:$0xff]
        %v372 = vld [vmem:[#allocation5 + $0x80] sm:$0xff]
        %v373 = vld [vmem:[#allocation5 + $0x88] sm:$0xff]
        %v374 = vld [vmem:[#allocation5 + $0x90] sm:$0xff]
        %v375 = vld [vmem:[#allocation5 + $0x98] sm:$0xff]
        %v376 = vld [vmem:[#allocation5 + $0xa0] sm:$0xff]
        %v377 = vld [vmem:[#allocation5 + $0xa8] sm:$0xff]
        %v378 = vld [vmem:[#allocation5 + $0xb0] sm:$0xff]
        %v379 = vld [vmem:[#allocation5 + $0xb8] sm:$0xff]
        %v380 = vld [vmem:[#allocation5 + $0xc0] sm:$0xff]
        %v381 = vld [vmem:[#allocation5 + $0xc8] sm:$0xff]
        %v382 = vld [vmem:[#allocation5 + $0xd0] sm:$0xff]
        %v383 = vld [vmem:[#allocation5 + $0xd8] sm:$0xff]
        %v384 = vld [vmem:[#allocation5 + $0xe0] sm:$0xff]
        %v385 = vld [vmem:[#allocation5 + $0xe8] sm:$0xff]
        %v386 = vld [vmem:[#allocation5 + $0xf0] sm:$0xff]
        %v387 = vld [vmem:[#allocation5 + $0xf8] sm:$0xff]
        %v388 = vld [vmem:[%s2] sm:$0x1]
        %v390 = vlaneseq
        %v391 = vshrl.u32 %v390, 7
        %v392 = vsub.s32 0, %v391
        %v393 = vrot.slane %v388, %v392
        %395 = vmatprep.subr.mxu0 0.0
        %396 = vmatpush1.msra.mxu0 %v356
        %397 = vmatprep.subr.mxu0 0.0
        %398 = vmatpush1.msra.mxu0 %v357
        %399 = vmatprep.subr.mxu0 0.0
        %400 = vmatpush1.msra.mxu0 %v358
        %401 = vmatprep.subr.mxu0 0.0
        %402 = vmatpush1.msra.mxu0 %v359
        %403 = vmatprep.subr.mxu0 0.0
        %404 = vmatpush1.msra.mxu0 %v360
        %405 = vmatprep.subr.mxu0 0.0
        %406 = vmatpush1.msra.mxu0 %v361
        %407 = vmatprep.subr.mxu0 0.0
        %408 = vmatpush1.msra.mxu0 %v362
        %409 = vmatprep.subr.mxu0 0.0
        %410 = vmatpush1.msra.mxu0 %v363
        %411 = vmatprep.subr.mxu0 0.0
        %412 = vmatpush1.msra.mxu0 %v364
        %413 = vmatprep.subr.mxu0 0.0
        %414 = vmatpush1.msra.mxu0 %v365
        %415 = vmatprep.subr.mxu0 0.0
        %416 = vmatpush1.msra.mxu0 %v366
        %417 = vmatprep.subr.mxu0 0.0
        %418 = vmatpush1.msra.mxu0 %v367
        %419 = vmatprep.subr.mxu0 0.0
        %420 = vmatpush1.msra.mxu0 %v368
        %421 = vmatprep.subr.mxu0 0.0
        %422 = vmatpush1.msra.mxu0 %v369
        %423 = vmatprep.subr.mxu0 0.0
        %424 = vmatpush1.msra.mxu0 %v370
        %425 = vmatprep.subr.mxu0 0.0
        %426 = vmatpush1.msra.mxu0 %v371
        %427 = vmatprep.subr.mxu0 0.0
        %428 = vmatpush1.msra.mxu0 %v372
        %429 = vmatprep.subr.mxu0 0.0
        %430 = vmatpush1.msra.mxu0 %v373
        %431 = vmatprep.subr.mxu0 0.0
        %432 = vmatpush1.msra.mxu0 %v374
        %433 = vmatprep.subr.mxu0 0.0
        %434 = vmatpush1.msra.mxu0 %v375
        %435 = vmatprep.subr.mxu0 0.0
        %436 = vmatpush1.msra.mxu0 %v376
        %437 = vmatprep.subr.mxu0 0.0
        %438 = vmatpush1.msra.mxu0 %v377
        %439 = vmatprep.subr.mxu0 0.0
        %440 = vmatpush1.msra.mxu0 %v378
        %441 = vmatprep.subr.mxu0 0.0
        %442 = vmatpush1.msra.mxu0 %v379
        %443 = vmatprep.subr.mxu0 0.0
        %444 = vmatpush1.msra.mxu0 %v380
        %445 = vmatprep.subr.mxu0 0.0
        %446 = vmatpush1.msra.mxu0 %v381
        %447 = vmatprep.subr.mxu0 0.0
        %448 = vmatpush1.msra.mxu0 %v382
        %449 = vmatprep.subr.mxu0 0.0
        %450 = vmatpush1.msra.mxu0 %v383
        %451 = vmatprep.subr.mxu0 0.0
        %452 = vmatpush1.msra.mxu0 %v384
        %453 = vmatprep.subr.mxu0 0.0
        %454 = vmatpush1.msra.mxu0 %v385
        %455 = vmatprep.subr.mxu0 0.0
        %456 = vmatpush1.msra.mxu0 %v386
        %457 = vmatprep.subr.mxu0 0.0
        %458 = vmatpush1.msra.mxu0 %v387
        %459 = vmatprep.mubr.f32.mxu0 %v293
        %460 = vmatmul.mubr.f32.gmra.mrb[0].mxu0 %v292
        %v461 = vpop.f32.mrb[0].mxu0
        %v462 = vadd.f32 %v393, %v461
        %v463 = vpop.f32.mrb[0].mxu0
        %464 = vmatprep.mubr.f32.mxu0 %v295
        %465 = vmatmul.mubr.f32.gmra.mrb[0].mxu0 %v294
        %v466 = vpop.f32.mrb[0].mxu0
        %v467 = vadd.f32 %v393, %v466
        %v468 = vpop.f32.mrb[0].mxu0
        %469 = vmatprep.mubr.f32.mxu0 %v297
        %470 = vmatmul.mubr.f32.gmra.mrb[0].mxu0 %v296
        %v471 = vpop.f32.mrb[0].mxu0
        %v472 = vadd.f32 %v393, %v471
        %v473 = vpop.f32.mrb[0].mxu0
        %474 = vmatprep.mubr.f32.mxu0 %v299
        %475 = vmatmul.mubr.f32.gmra.mrb[0].mxu0 %v298
        %v476 = vpop.f32.mrb[0].mxu0
        %v477 = vadd.f32 %v393, %v476
        %v478 = vpop.f32.mrb[0].mxu0
        %479 = vmatprep.mubr.f32.mxu0 %v301
        %480 = vmatmul.mubr.f32.gmra.mrb[0].mxu0 %v300
        %v481 = vpop.f32.mrb[0].mxu0
        %v482 = vadd.f32 %v393, %v481
        %v483 = vpop.f32.mrb[0].mxu0
        %484 = vmatprep.mubr.f32.mxu0 %v303
        %485 = vmatmul.mubr.f32.gmra.mrb[0].mxu0 %v302
        %v486 = vpop.f32.mrb[0].mxu0
        %v487 = vadd.f32 %v393, %v486
        %v488 = vpop.f32.mrb[0].mxu0
        %489 = vmatprep.mubr.f32.mxu0 %v305
        %490 = vmatmul.mubr.f32.gmra.mrb[0].mxu0 %v304
        %v491 = vpop.f32.mrb[0].mxu0
        %v492 = vadd.f32 %v393, %v491
        %v493 = vpop.f32.mrb[0].mxu0
        %494 = vmatprep.mubr.f32.mxu0 %v307
        %495 = vmatmul.mubr.f32.gmra.mrb[0].mxu0 %v306
        %v496 = vpop.f32.mrb[0].mxu0
        %v497 = vadd.f32 %v393, %v496
        %v498 = vpop.f32.mrb[0].mxu0
        %499 = vmatprep.mubr.f32.mxu0 %v309
        %500 = vmatmul.mubr.f32.gmra.mrb[0].mxu0 %v308
        %v501 = vpop.f32.mrb[0].mxu0
        %v502 = vadd.f32 %v393, %v501
        %v503 = vpop.f32.mrb[0].mxu0
        %504 = vmatprep.mubr.f32.mxu0 %v311
        %505 = vmatmul.mubr.f32.gmra.mrb[0].mxu0 %v310
        %v506 = vpop.f32.mrb[0].mxu0
        %v507 = vadd.f32 %v393, %v506
        %v508 = vpop.f32.mrb[0].mxu0
        %509 = vmatprep.mubr.f32.mxu0 %v313
        %510 = vmatmul.mubr.f32.gmra.mrb[0].mxu0 %v312
        %v511 = vpop.f32.mrb[0].mxu0
        %v512 = vadd.f32 %v393, %v511
        %v513 = vpop.f32.mrb[0].mxu0
        %514 = vmatprep.mubr.f32.mxu0 %v315
        %515 = vmatmul.mubr.f32.gmra.mrb[0].mxu0 %v314
        %v516 = vpop.f32.mrb[0].mxu0
        %v517 = vadd.f32 %v393, %v516
        %v518 = vpop.f32.mrb[0].mxu0
        %519 = vmatprep.mubr.f32.mxu0 %v317
        %520 = vmatmul.mubr.f32.gmra.mrb[0].mxu0 %v316
        %v521 = vpop.f32.mrb[0].mxu0
        %v522 = vadd.f32 %v393, %v521
        %v523 = vpop.f32.mrb[0].mxu0
        %524 = vmatprep.mubr.f32.mxu0 %v319
        %525 = vmatmul.mubr.f32.gmra.mrb[0].mxu0 %v318
        %v526 = vpop.f32.mrb[0].mxu0
        %v527 = vadd.f32 %v393, %v526
        %v528 = vpop.f32.mrb[0].mxu0
        %529 = vmatprep.mubr.f32.mxu0 %v321
        %530 = vmatmul.mubr.f32.gmra.mrb[0].mxu0 %v320
        %v531 = vpop.f32.mrb[0].mxu0
        %v532 = vadd.f32 %v393, %v531
        %v533 = vpop.f32.mrb[0].mxu0
        %534 = vmatprep.mubr.f32.mxu0 %v323
        %535 = vmatmul.mubr.f32.gmra.mrb[0].mxu0 %v322
        %v536 = vpop.f32.mrb[0].mxu0
        %v537 = vadd.f32 %v393, %v536
        %v538 = vpop.f32.mrb[0].mxu0
        %539 = vmatprep.mubr.f32.mxu0 %v325
        %540 = vmatmul.mubr.f32.gmra.mrb[0].mxu0 %v324
        %v541 = vpop.f32.mrb[0].mxu0
        %v542 = vadd.f32 %v393, %v541
        %v543 = vpop.f32.mrb[0].mxu0
        %544 = vmatprep.mubr.f32.mxu0 %v327
        %545 = vmatmul.mubr.f32.gmra.mrb[0].mxu0 %v326
        %v546 = vpop.f32.mrb[0].mxu0
        %v547 = vadd.f32 %v393, %v546
        %v548 = vpop.f32.mrb[0].mxu0
        %549 = vmatprep.mubr.f32.mxu0 %v329
        %550 = vmatmul.mubr.f32.gmra.mrb[0].mxu0 %v328
        %v551 = vpop.f32.mrb[0].mxu0
        %v552 = vadd.f32 %v393, %v551
        %v553 = vpop.f32.mrb[0].mxu0
        %554 = vmatprep.mubr.f32.mxu0 %v331
        %555 = vmatmul.mubr.f32.gmra.mrb[0].mxu0 %v330
        %v556 = vpop.f32.mrb[0].mxu0
        %v557 = vadd.f32 %v393, %v556
        %v558 = vpop.f32.mrb[0].mxu0
        %559 = vmatprep.mubr.f32.mxu0 %v333
        %560 = vmatmul.mubr.f32.gmra.mrb[0].mxu0 %v332
        %v561 = vpop.f32.mrb[0].mxu0
        %v562 = vadd.f32 %v393, %v561
        %v563 = vpop.f32.mrb[0].mxu0
        %564 = vmatprep.mubr.f32.mxu0 %v335
        %565 = vmatmul.mubr.f32.gmra.mrb[0].mxu0 %v334
        %v566 = vpop.f32.mrb[0].mxu0
        %v567 = vadd.f32 %v393, %v566
        %v568 = vpop.f32.mrb[0].mxu0
        %569 = vmatprep.mubr.f32.mxu0 %v337
        %570 = vmatmul.mubr.f32.gmra.mrb[0].mxu0 %v336
        %v571 = vpop.f32.mrb[0].mxu0
        %v572 = vadd.f32 %v393, %v571
        %v573 = vpop.f32.mrb[0].mxu0
        %574 = vmatprep.mubr.f32.mxu0 %v339
        %575 = vmatmul.mubr.f32.gmra.mrb[0].mxu0 %v338
        %v576 = vpop.f32.mrb[0].mxu0
        %v577 = vadd.f32 %v393, %v576
        %v578 = vpop.f32.mrb[0].mxu0
        %579 = vmatprep.mubr.f32.mxu0 %v341
        %580 = vmatmul.mubr.f32.gmra.mrb[0].mxu0 %v340
        %v581 = vpop.f32.mrb[0].mxu0
        %v582 = vadd.f32 %v393, %v581
        %v583 = vpop.f32.mrb[0].mxu0
        %584 = vmatprep.mubr.f32.mxu0 %v343
        %585 = vmatmul.mubr.f32.gmra.mrb[0].mxu0 %v342
        %v586 = vpop.f32.mrb[0].mxu0
        %v587 = vadd.f32 %v393, %v586
        %v588 = vpop.f32.mrb[0].mxu0
        %589 = vmatprep.mubr.f32.mxu0 %v345
        %590 = vmatmul.mubr.f32.gmra.mrb[0].mxu0 %v344
        %v591 = vpop.f32.mrb[0].mxu0
        %v592 = vadd.f32 %v393, %v591
        %v593 = vpop.f32.mrb[0].mxu0
        %594 = vmatprep.mubr.f32.mxu0 %v347
        %595 = vmatmul.mubr.f32.gmra.mrb[0].mxu0 %v346
        %v596 = vpop.f32.mrb[0].mxu0
        %v597 = vadd.f32 %v393, %v596
        %v598 = vpop.f32.mrb[0].mxu0
        %599 = vmatprep.mubr.f32.mxu0 %v349
        %600 = vmatmul.mubr.f32.gmra.mrb[0].mxu0 %v348
        %v601 = vpop.f32.mrb[0].mxu0
        %v602 = vadd.f32 %v393, %v601
        %v603 = vpop.f32.mrb[0].mxu0
        %604 = vmatprep.mubr.f32.mxu0 %v351
        %605 = vmatmul.mubr.f32.gmra.mrb[0].mxu0 %v350
        %v606 = vpop.f32.mrb[0].mxu0
        %v607 = vadd.f32 %v393, %v606
        %v608 = vpop.f32.mrb[0].mxu0
        %609 = vmatprep.mubr.f32.mxu0 %v353
        %610 = vmatmul.mubr.f32.gmra.mrb[0].mxu0 %v352
        %v611 = vpop.f32.mrb[0].mxu0
        %v612 = vadd.f32 %v393, %v611
        %v613 = vpop.f32.mrb[0].mxu0
        %614 = vmatprep.mubr.f32.mxu0 %v355
        %615 = vmatmul.mubr.f32.gmra.mrb[0].mxu0 %v354
        %v616 = vpop.f32.mrb[0].mxu0
        %v617 = vadd.f32 %v393, %v616
        %v618 = vpop.f32.mrb[0].mxu0
        %619 = vdwg.mxu0
        %v620 = vmax.f32 %v462, 0.0
        %v621 = vmax.f32 %v467, 0.0
        %v622 = vmax.f32 %v472, 0.0
        %v623 = vmax.f32 %v477, 0.0
        %v624 = vmax.f32 %v482, 0.0
        %v625 = vmax.f32 %v487, 0.0
        %v626 = vmax.f32 %v492, 0.0
        %v627 = vmax.f32 %v497, 0.0
        %v628 = vmax.f32 %v502, 0.0
        %v629 = vmax.f32 %v507, 0.0
        %v630 = vmax.f32 %v512, 0.0
        %v631 = vmax.f32 %v517, 0.0
        %v632 = vmax.f32 %v522, 0.0
        %v633 = vmax.f32 %v527, 0.0
        %v634 = vmax.f32 %v532, 0.0
        %v635 = vmax.f32 %v537, 0.0
        %v636 = vmax.f32 %v542, 0.0
        %v637 = vmax.f32 %v547, 0.0
        %v638 = vmax.f32 %v552, 0.0
        %v639 = vmax.f32 %v557, 0.0
        %v640 = vmax.f32 %v562, 0.0
        %v641 = vmax.f32 %v567, 0.0
        %v642 = vmax.f32 %v572, 0.0
        %v643 = vmax.f32 %v577, 0.0
        %v644 = vmax.f32 %v582, 0.0
        %v645 = vmax.f32 %v587, 0.0
        %v646 = vmax.f32 %v592, 0.0
        %v647 = vmax.f32 %v597, 0.0
        %v648 = vmax.f32 %v602, 0.0
        %v649 = vmax.f32 %v607, 0.0
        %v650 = vmax.f32 %v612, 0.0
        %v651 = vmax.f32 %v617, 0.0
        %v652 = vld [vmem:[#allocation7] sm:$0xff]
        %v653 = vld [vmem:[#allocation7 + $0x8] sm:$0xff]
        %v654 = vld [vmem:[#allocation7 + $0x10] sm:$0xff]
        %v655 = vld [vmem:[#allocation7 + $0x18] sm:$0xff]
        %v656 = vld [vmem:[#allocation7 + $0x20] sm:$0xff]
        %v657 = vld [vmem:[#allocation7 + $0x28] sm:$0xff]
        %v658 = vld [vmem:[#allocation7 + $0x30] sm:$0xff]
        %v659 = vld [vmem:[#allocation7 + $0x38] sm:$0xff]
        %v660 = vld [vmem:[#allocation7 + $0x40] sm:$0xff]
        %v661 = vld [vmem:[#allocation7 + $0x48] sm:$0xff]
        %v662 = vld [vmem:[#allocation7 + $0x50] sm:$0xff]
        %v663 = vld [vmem:[#allocation7 + $0x58] sm:$0xff]
        %v664 = vld [vmem:[#allocation7 + $0x60] sm:$0xff]
        %v665 = vld [vmem:[#allocation7 + $0x68] sm:$0xff]
        %v666 = vld [vmem:[#allocation7 + $0x70] sm:$0xff]
        %v667 = vld [vmem:[#allocation7 + $0x78] sm:$0xff]
        %v668 = vld [vmem:[#allocation7 + $0x80] sm:$0xff]
        %v669 = vld [vmem:[#allocation7 + $0x88] sm:$0xff]
        %v670 = vld [vmem:[#allocation7 + $0x90] sm:$0xff]
        %v671 = vld [vmem:[#allocation7 + $0x98] sm:$0xff]
        %v672 = vld [vmem:[#allocation7 + $0xa0] sm:$0xff]
        %v673 = vld [vmem:[#allocation7 + $0xa8] sm:$0xff]
        %v674 = vld [vmem:[#allocation7 + $0xb0] sm:$0xff]
        %v675 = vld [vmem:[#allocation7 + $0xb8] sm:$0xff]
        %v676 = vld [vmem:[#allocation7 + $0xc0] sm:$0xff]
        %v677 = vld [vmem:[#allocation7 + $0xc8] sm:$0xff]
        %v678 = vld [vmem:[#allocation7 + $0xd0] sm:$0xff]
        %v679 = vld [vmem:[#allocation7 + $0xd8] sm:$0xff]
        %v680 = vld [vmem:[#allocation7 + $0xe0] sm:$0xff]
        %v681 = vld [vmem:[#allocation7 + $0xe8] sm:$0xff]
        %v682 = vld [vmem:[#allocation7 + $0xf0] sm:$0xff]
        %v683 = vld [vmem:[#allocation7 + $0xf8] sm:$0xff]
        %v684 = vld [vmem:[%s4] sm:$0x3]
        %v686 = vlaneseq
        %v687 = vshrl.u32 %v686, 7
        %v688 = vsub.s32 0, %v687
        %v689 = vrot.slane %v684, %v688
        %v690 = vlaneseq
        %v691 = vshrl.u32 %v690, 7
        %v692 = vsub.s32 1, %v691
        %v693 = vrot.slane %v684, %v692
        %696 = vmatprep.subr.mxu0 %v653
        %697 = vmatpush1.msra.mxu0 %v652
        %698 = vmatprep.subr.mxu0 %v655
        %699 = vmatpush1.msra.mxu0 %v654
        %700 = vmatprep.subr.mxu0 %v657
        %701 = vmatpush1.msra.mxu0 %v656
        %702 = vmatprep.subr.mxu0 %v659
        %703 = vmatpush1.msra.mxu0 %v658
        %704 = vmatprep.subr.mxu0 %v661
        %705 = vmatpush1.msra.mxu0 %v660
        %706 = vmatprep.subr.mxu0 %v663
        %707 = vmatpush1.msra.mxu0 %v662
        %708 = vmatprep.subr.mxu0 %v665
        %709 = vmatpush1.msra.mxu0 %v664
        %710 = vmatprep.subr.mxu0 %v667
        %711 = vmatpush1.msra.mxu0 %v666
        %712 = vmatprep.subr.mxu0 %v669
        %713 = vmatpush1.msra.mxu0 %v668
        %714 = vmatprep.subr.mxu0 %v671
        %715 = vmatpush1.msra.mxu0 %v670
        %716 = vmatprep.subr.mxu0 %v673
        %717 = vmatpush1.msra.mxu0 %v672
        %718 = vmatprep.subr.mxu0 %v675
        %719 = vmatpush1.msra.mxu0 %v674
        %720 = vmatprep.subr.mxu0 %v677
        %721 = vmatpush1.msra.mxu0 %v676
        %722 = vmatprep.subr.mxu0 %v679
        %723 = vmatpush1.msra.mxu0 %v678
        %724 = vmatprep.subr.mxu0 %v681
        %725 = vmatpush1.msra.mxu0 %v680
        %726 = vmatprep.subr.mxu0 %v683
        %727 = vmatpush1.msra.mxu0 %v682
        %728 = vmatprep.subr.mxu0 0.0
        %729 = vmatpush1.msra.mxu0 0.0
        %730 = vmatprep.subr.mxu0 0.0
        %731 = vmatpush1.msra.mxu0 0.0
        %732 = vmatprep.subr.mxu0 0.0
        %733 = vmatpush1.msra.mxu0 0.0
        %734 = vmatprep.subr.mxu0 0.0
        %735 = vmatpush1.msra.mxu0 0.0
        %736 = vmatprep.subr.mxu0 0.0
        %737 = vmatpush1.msra.mxu0 0.0
        %738 = vmatprep.subr.mxu0 0.0
        %739 = vmatpush1.msra.mxu0 0.0
        %740 = vmatprep.subr.mxu0 0.0
        %741 = vmatpush1.msra.mxu0 0.0
        %742 = vmatprep.subr.mxu0 0.0
        %743 = vmatpush1.msra.mxu0 0.0
        %744 = vmatprep.subr.mxu0 0.0
        %745 = vmatpush1.msra.mxu0 0.0
        %746 = vmatprep.subr.mxu0 0.0
        %747 = vmatpush1.msra.mxu0 0.0
        %748 = vmatprep.subr.mxu0 0.0
        %749 = vmatpush1.msra.mxu0 0.0
        %750 = vmatprep.subr.mxu0 0.0
        %751 = vmatpush1.msra.mxu0 0.0
        %752 = vmatprep.subr.mxu0 0.0
        %753 = vmatpush1.msra.mxu0 0.0
        %754 = vmatprep.subr.mxu0 0.0
        %755 = vmatpush1.msra.mxu0 0.0
        %756 = vmatprep.subr.mxu0 0.0
        %757 = vmatpush1.msra.mxu0 0.0
        %758 = vmatprep.subr.mxu0 0.0
        %759 = vmatpush1.msra.mxu0 0.0
        %760 = vmatprep.mubr.f32.mxu0 0.0
        %761 = vmatmul.mubr.f32.gmra.mrb[0].mxu0 %v620
        %v762 = vpop.f32.mrb[0].mxu0
        %v763 = vadd.f32 %v689, %v762
        %v764 = vpop.f32.mrb[0].mxu0
        %v765 = vadd.f32 %v693, %v764
        %766 = vmatprep.mubr.f32.mxu0 0.0
        %767 = vmatmul.mubr.f32.gmra.mrb[0].mxu0 %v621
        %v768 = vpop.f32.mrb[0].mxu0
        %v769 = vadd.f32 %v689, %v768
        %v770 = vpop.f32.mrb[0].mxu0
        %v771 = vadd.f32 %v693, %v770
        %772 = vmatprep.mubr.f32.mxu0 0.0
        %773 = vmatmul.mubr.f32.gmra.mrb[0].mxu0 %v622
        %v774 = vpop.f32.mrb[0].mxu0
        %v775 = vadd.f32 %v689, %v774
        %v776 = vpop.f32.mrb[0].mxu0
        %v777 = vadd.f32 %v693, %v776
        %778 = vmatprep.mubr.f32.mxu0 0.0
        %779 = vmatmul.mubr.f32.gmra.mrb[0].mxu0 %v623
        %v780 = vpop.f32.mrb[0].mxu0
        %v781 = vadd.f32 %v689, %v780
        %v782 = vpop.f32.mrb[0].mxu0
        %v783 = vadd.f32 %v693, %v782
        %784 = vmatprep.mubr.f32.mxu0 0.0
        %785 = vmatmul.mubr.f32.gmra.mrb[0].mxu0 %v624
        %v786 = vpop.f32.mrb[0].mxu0
        %v787 = vadd.f32 %v689, %v786
        %v788 = vpop.f32.mrb[0].mxu0
        %v789 = vadd.f32 %v693, %v788
        %790 = vmatprep.mubr.f32.mxu0 0.0
        %791 = vmatmul.mubr.f32.gmra.mrb[0].mxu0 %v625
        %v792 = vpop.f32.mrb[0].mxu0
        %v793 = vadd.f32 %v689, %v792
        %v794 = vpop.f32.mrb[0].mxu0
        %v795 = vadd.f32 %v693, %v794
        %796 = vmatprep.mubr.f32.mxu0 0.0
        %797 = vmatmul.mubr.f32.gmra.mrb[0].mxu0 %v626
        %v798 = vpop.f32.mrb[0].mxu0
        %v799 = vadd.f32 %v689, %v798
        %v800 = vpop.f32.mrb[0].mxu0
        %v801 = vadd.f32 %v693, %v800
        %802 = vmatprep.mubr.f32.mxu0 0.0
        %803 = vmatmul.mubr.f32.gmra.mrb[0].mxu0 %v627
        %v804 = vpop.f32.mrb[0].mxu0
        %v805 = vadd.f32 %v689, %v804
        %v806 = vpop.f32.mrb[0].mxu0
        %v807 = vadd.f32 %v693, %v806
        %808 = vmatprep.mubr.f32.mxu0 0.0
        %809 = vmatmul.mubr.f32.gmra.mrb[0].mxu0 %v628
        %v810 = vpop.f32.mrb[0].mxu0
        %v811 = vadd.f32 %v689, %v810
        %v812 = vpop.f32.mrb[0].mxu0
        %v813 = vadd.f32 %v693, %v812
        %814 = vmatprep.mubr.f32.mxu0 0.0
        %815 = vmatmul.mubr.f32.gmra.mrb[0].mxu0 %v629
        %v816 = vpop.f32.mrb[0].mxu0
        %v817 = vadd.f32 %v689, %v816
        %v818 = vpop.f32.mrb[0].mxu0
        %v819 = vadd.f32 %v693, %v818
        %820 = vmatprep.mubr.f32.mxu0 0.0
        %821 = vmatmul.mubr.f32.gmra.mrb[0].mxu0 %v630
        %v822 = vpop.f32.mrb[0].mxu0
        %v823 = vadd.f32 %v689, %v822
        %v824 = vpop.f32.mrb[0].mxu0
        %v825 = vadd.f32 %v693, %v824
        %826 = vmatprep.mubr.f32.mxu0 0.0
        %827 = vmatmul.mubr.f32.gmra.mrb[0].mxu0 %v631
        %v828 = vpop.f32.mrb[0].mxu0
        %v829 = vadd.f32 %v689, %v828
        %v830 = vpop.f32.mrb[0].mxu0
        %v831 = vadd.f32 %v693, %v830
        %832 = vmatprep.mubr.f32.mxu0 0.0
        %833 = vmatmul.mubr.f32.gmra.mrb[0].mxu0 %v632
        %v834 = vpop.f32.mrb[0].mxu0
        %v835 = vadd.f32 %v689, %v834
        %v836 = vpop.f32.mrb[0].mxu0
        %v837 = vadd.f32 %v693, %v836
        %838 = vmatprep.mubr.f32.mxu0 0.0
        %839 = vmatmul.mubr.f32.gmra.mrb[0].mxu0 %v633
        %v840 = vpop.f32.mrb[0].mxu0
        %v841 = vadd.f32 %v689, %v840
        %v842 = vpop.f32.mrb[0].mxu0
        %v843 = vadd.f32 %v693, %v842
        %844 = vmatprep.mubr.f32.mxu0 0.0
        %845 = vmatmul.mubr.f32.gmra.mrb[0].mxu0 %v634
        %v846 = vpop.f32.mrb[0].mxu0
        %v847 = vadd.f32 %v689, %v846
        %v848 = vpop.f32.mrb[0].mxu0
        %v849 = vadd.f32 %v693, %v848
        %850 = vmatprep.mubr.f32.mxu0 0.0
        %851 = vmatmul.mubr.f32.gmra.mrb[0].mxu0 %v635
        %v852 = vpop.f32.mrb[0].mxu0
        %v853 = vadd.f32 %v689, %v852
        %v854 = vpop.f32.mrb[0].mxu0
        %v855 = vadd.f32 %v693, %v854
        %856 = vmatprep.mubr.f32.mxu0 0.0
        %857 = vmatmul.mubr.f32.gmra.mrb[0].mxu0 %v636
        %v858 = vpop.f32.mrb[0].mxu0
        %v859 = vadd.f32 %v689, %v858
        %v860 = vpop.f32.mrb[0].mxu0
        %v861 = vadd.f32 %v693, %v860
        %862 = vmatprep.mubr.f32.mxu0 0.0
        %863 = vmatmul.mubr.f32.gmra.mrb[0].mxu0 %v637
        %v864 = vpop.f32.mrb[0].mxu0
        %v865 = vadd.f32 %v689, %v864
        %v866 = vpop.f32.mrb[0].mxu0
        %v867 = vadd.f32 %v693, %v866
        %868 = vmatprep.mubr.f32.mxu0 0.0
        %869 = vmatmul.mubr.f32.gmra.mrb[0].mxu0 %v638
        %v870 = vpop.f32.mrb[0].mxu0
        %v871 = vadd.f32 %v689, %v870
        %v872 = vpop.f32.mrb[0].mxu0
        %v873 = vadd.f32 %v693, %v872
        %874 = vmatprep.mubr.f32.mxu0 0.0
        %875 = vmatmul.mubr.f32.gmra.mrb[0].mxu0 %v639
        %v876 = vpop.f32.mrb[0].mxu0
        %v877 = vadd.f32 %v689, %v876
        %v878 = vpop.f32.mrb[0].mxu0
        %v879 = vadd.f32 %v693, %v878
        %880 = vmatprep.mubr.f32.mxu0 0.0
        %881 = vmatmul.mubr.f32.gmra.mrb[0].mxu0 %v640
        %v882 = vpop.f32.mrb[0].mxu0
        %v883 = vadd.f32 %v689, %v882
        %v884 = vpop.f32.mrb[0].mxu0
        %v885 = vadd.f32 %v693, %v884
        %886 = vmatprep.mubr.f32.mxu0 0.0
        %887 = vmatmul.mubr.f32.gmra.mrb[0].mxu0 %v641
        %v888 = vpop.f32.mrb[0].mxu0
        %v889 = vadd.f32 %v689, %v888
        %v890 = vpop.f32.mrb[0].mxu0
        %v891 = vadd.f32 %v693, %v890
        %892 = vmatprep.mubr.f32.mxu0 0.0
        %893 = vmatmul.mubr.f32.gmra.mrb[0].mxu0 %v642
        %v894 = vpop.f32.mrb[0].mxu0
        %v895 = vadd.f32 %v689, %v894
        %v896 = vpop.f32.mrb[0].mxu0
        %v897 = vadd.f32 %v693, %v896
        %898 = vmatprep.mubr.f32.mxu0 0.0
        %899 = vmatmul.mubr.f32.gmra.mrb[0].mxu0 %v643
        %v900 = vpop.f32.mrb[0].mxu0
        %v901 = vadd.f32 %v689, %v900
        %v902 = vpop.f32.mrb[0].mxu0
        %v903 = vadd.f32 %v693, %v902
        %904 = vmatprep.mubr.f32.mxu0 0.0
        %905 = vmatmul.mubr.f32.gmra.mrb[0].mxu0 %v644
        %v906 = vpop.f32.mrb[0].mxu0
        %v907 = vadd.f32 %v689, %v906
        %v908 = vpop.f32.mrb[0].mxu0
        %v909 = vadd.f32 %v693, %v908
        %910 = vmatprep.mubr.f32.mxu0 0.0
        %911 = vmatmul.mubr.f32.gmra.mrb[0].mxu0 %v645
        %v912 = vpop.f32.mrb[0].mxu0
        %v913 = vadd.f32 %v689, %v912
        %v914 = vpop.f32.mrb[0].mxu0
        %v915 = vadd.f32 %v693, %v914
        %916 = vmatprep.mubr.f32.mxu0 0.0
        %917 = vmatmul.mubr.f32.gmra.mrb[0].mxu0 %v646
        %v918 = vpop.f32.mrb[0].mxu0
        %v919 = vadd.f32 %v689, %v918
        %v920 = vpop.f32.mrb[0].mxu0
        %v921 = vadd.f32 %v693, %v920
        %922 = vmatprep.mubr.f32.mxu0 0.0
        %923 = vmatmul.mubr.f32.gmra.mrb[0].mxu0 %v647
        %v924 = vpop.f32.mrb[0].mxu0
        %v925 = vadd.f32 %v689, %v924
        %v926 = vpop.f32.mrb[0].mxu0
        %v927 = vadd.f32 %v693, %v926
        %928 = vmatprep.mubr.f32.mxu0 0.0
        %929 = vmatmul.mubr.f32.gmra.mrb[0].mxu0 %v648
        %v930 = vpop.f32.mrb[0].mxu0
        %v931 = vadd.f32 %v689, %v930
        %v932 = vpop.f32.mrb[0].mxu0
        %v933 = vadd.f32 %v693, %v932
        %934 = vmatprep.mubr.f32.mxu0 0.0
        %935 = vmatmul.mubr.f32.gmra.mrb[0].mxu0 %v649
        %v936 = vpop.f32.mrb[0].mxu0
        %v937 = vadd.f32 %v689, %v936
        %v938 = vpop.f32.mrb[0].mxu0
        %v939 = vadd.f32 %v693, %v938
        %940 = vmatprep.mubr.f32.mxu0 0.0
        %941 = vmatmul.mubr.f32.gmra.mrb[0].mxu0 %v650
        %v942 = vpop.f32.mrb[0].mxu0
        %v943 = vadd.f32 %v689, %v942
        %v944 = vpop.f32.mrb[0].mxu0
        %v945 = vadd.f32 %v693, %v944
        %946 = vmatprep.mubr.f32.mxu0 0.0
        %947 = vmatmul.mubr.f32.gmra.mrb[0].mxu0 %v651
        %v948 = vpop.f32.mrb[0].mxu0
        %v949 = vadd.f32 %v689, %v948
        %v950 = vpop.f32.mrb[0].mxu0
        %v951 = vadd.f32 %v693, %v950
        %952 = vdwg.mxu0
        %v953 = vmax.f32 %v763, 0.0
        %v954 = vmax.f32 %v765, 0.0
        %v955 = vmax.f32 %v769, 0.0
        %v956 = vmax.f32 %v771, 0.0
        %v957 = vmax.f32 %v775, 0.0
        %v958 = vmax.f32 %v777, 0.0
        %v959 = vmax.f32 %v781, 0.0
        %v960 = vmax.f32 %v783, 0.0
        %v961 = vmax.f32 %v787, 0.0
        %v962 = vmax.f32 %v789, 0.0
        %v963 = vmax.f32 %v793, 0.0
        %v964 = vmax.f32 %v795, 0.0
        %v965 = vmax.f32 %v799, 0.0
        %v966 = vmax.f32 %v801, 0.0
        %v967 = vmax.f32 %v805, 0.0
        %v968 = vmax.f32 %v807, 0.0
        %v969 = vmax.f32 %v811, 0.0
        %v970 = vmax.f32 %v813, 0.0
        %v971 = vmax.f32 %v817, 0.0
        %v972 = vmax.f32 %v819, 0.0
        %v973 = vmax.f32 %v823, 0.0
        %v974 = vmax.f32 %v825, 0.0
        %v975 = vmax.f32 %v829, 0.0
        %v976 = vmax.f32 %v831, 0.0
        %v977 = vmax.f32 %v835, 0.0
        %v978 = vmax.f32 %v837, 0.0
        %v979 = vmax.f32 %v841, 0.0
        %v980 = vmax.f32 %v843, 0.0
        %v981 = vmax.f32 %v847, 0.0
        %v982 = vmax.f32 %v849, 0.0
        %v983 = vmax.f32 %v853, 0.0
        %v984 = vmax.f32 %v855, 0.0
        %v985 = vmax.f32 %v859, 0.0
        %v986 = vmax.f32 %v861, 0.0
        %v987 = vmax.f32 %v865, 0.0
        %v988 = vmax.f32 %v867, 0.0
        %v989 = vmax.f32 %v871, 0.0
        %v990 = vmax.f32 %v873, 0.0
        %v991 = vmax.f32 %v877, 0.0
        %v992 = vmax.f32 %v879, 0.0
        %v993 = vmax.f32 %v883, 0.0
        %v994 = vmax.f32 %v885, 0.0
        %v995 = vmax.f32 %v889, 0.0
        %v996 = vmax.f32 %v891, 0.0
        %v997 = vmax.f32 %v895, 0.0
        %v998 = vmax.f32 %v897, 0.0
        %v999 = vmax.f32 %v901, 0.0
        %v1000 = vmax.f32 %v903, 0.0
        %v1001 = vmax.f32 %v907, 0.0
        %v1002 = vmax.f32 %v909, 0.0
        %v1003 = vmax.f32 %v913, 0.0
        %v1004 = vmax.f32 %v915, 0.0
        %v1005 = vmax.f32 %v919, 0.0
        %v1006 = vmax.f32 %v921, 0.0
        %v1007 = vmax.f32 %v925, 0.0
        %v1008 = vmax.f32 %v927, 0.0
        %v1009 = vmax.f32 %v931, 0.0
        %v1010 = vmax.f32 %v933, 0.0
        %v1011 = vmax.f32 %v937, 0.0
        %v1012 = vmax.f32 %v939, 0.0
        %v1013 = vmax.f32 %v943, 0.0
        %v1014 = vmax.f32 %v945, 0.0
        %v1015 = vmax.f32 %v949, 0.0
        %v1016 = vmax.f32 %v951, 0.0
        %1017 = vst [vmem:[%s279] sm:$0xff] %v953
        %1018 = vst [vmem:[%s279 + $0x8] sm:$0xff] %v954
        %1019 = vst [vmem:[%s279 + $0x10] sm:$0xff] %v955
        %1020 = vst [vmem:[%s279 + $0x18] sm:$0xff] %v956
        %1021 = vst [vmem:[%s279 + $0x20] sm:$0xff] %v957
        %1022 = vst [vmem:[%s279 + $0x28] sm:$0xff] %v958
        %1023 = vst [vmem:[%s279 + $0x30] sm:$0xff] %v959
        %1024 = vst [vmem:[%s279 + $0x38] sm:$0xff] %v960
        %1025 = vst [vmem:[%s279 + $0x40] sm:$0xff] %v961
        %1026 = vst [vmem:[%s279 + $0x48] sm:$0xff] %v962
        %1027 = vst [vmem:[%s279 + $0x50] sm:$0xff] %v963
        %1028 = vst [vmem:[%s279 + $0x58] sm:$0xff] %v964
        %1029 = vst [vmem:[%s279 + $0x60] sm:$0xff] %v965
        %1030 = vst [vmem:[%s279 + $0x68] sm:$0xff] %v966
        %1031 = vst [vmem:[%s279 + $0x70] sm:$0xff] %v967
        %1032 = vst [vmem:[%s279 + $0x78] sm:$0xff] %v968
        %1033 = vst [vmem:[%s279 + $0x80] sm:$0xff] %v969
        %1034 = vst [vmem:[%s279 + $0x88] sm:$0xff] %v970
        %1035 = vst [vmem:[%s279 + $0x90] sm:$0xff] %v971
        %1036 = vst [vmem:[%s279 + $0x98] sm:$0xff] %v972
        %1037 = vst [vmem:[%s279 + $0xa0] sm:$0xff] %v973
        %1038 = vst [vmem:[%s279 + $0xa8] sm:$0xff] %v974
        %1039 = vst [vmem:[%s279 + $0xb0] sm:$0xff] %v975
        %1040 = vst [vmem:[%s279 + $0xb8] sm:$0xff] %v976
        %1041 = vst [vmem:[%s279 + $0xc0] sm:$0xff] %v977
        %1042 = vst [vmem:[%s279 + $0xc8] sm:$0xff] %v978
        %1043 = vst [vmem:[%s279 + $0xd0] sm:$0xff] %v979
        %1044 = vst [vmem:[%s279 + $0xd8] sm:$0xff] %v980
        %1045 = vst [vmem:[%s279 + $0xe0] sm:$0xff] %v981
        %1046 = vst [vmem:[%s279 + $0xe8] sm:$0xff] %v982
        %1047 = vst [vmem:[%s279 + $0xf0] sm:$0xff] %v983
        %1048 = vst [vmem:[%s279 + $0xf8] sm:$0xff] %v984
        %1049 = vst [vmem:[%s279 + $0x100] sm:$0xff] %v985
        %1050 = vst [vmem:[%s279 + $0x108] sm:$0xff] %v986
        %1051 = vst [vmem:[%s279 + $0x110] sm:$0xff] %v987
        %1052 = vst [vmem:[%s279 + $0x118] sm:$0xff] %v988
        %1053 = vst [vmem:[%s279 + $0x120] sm:$0xff] %v989
        %1054 = vst [vmem:[%s279 + $0x128] sm:$0xff] %v990
        %1055 = vst [vmem:[%s279 + $0x130] sm:$0xff] %v991
        %1056 = vst [vmem:[%s279 + $0x138] sm:$0xff] %v992
        %1057 = vst [vmem:[%s279 + $0x140] sm:$0xff] %v993
        %1058 = vst [vmem:[%s279 + $0x148] sm:$0xff] %v994
        %1059 = vst [vmem:[%s279 + $0x150] sm:$0xff] %v995
        %1060 = vst [vmem:[%s279 + $0x158] sm:$0xff] %v996
        %1061 = vst [vmem:[%s279 + $0x160] sm:$0xff] %v997
        %1062 = vst [vmem:[%s279 + $0x168] sm:$0xff] %v998
        %1063 = vst [vmem:[%s279 + $0x170] sm:$0xff] %v999
        %1064 = vst [vmem:[%s279 + $0x178] sm:$0xff] %v1000
        %1065 = vst [vmem:[%s279 + $0x180] sm:$0xff] %v1001
        %1066 = vst [vmem:[%s279 + $0x188] sm:$0xff] %v1002
        %1067 = vst [vmem:[%s279 + $0x190] sm:$0xff] %v1003
        %1068 = vst [vmem:[%s279 + $0x198] sm:$0xff] %v1004
        %1069 = vst [vmem:[%s279 + $0x1a0] sm:$0xff] %v1005
        %1070 = vst [vmem:[%s279 + $0x1a8] sm:$0xff] %v1006
        %1071 = vst [vmem:[%s279 + $0x1b0] sm:$0xff] %v1007
        %1072 = vst [vmem:[%s279 + $0x1b8] sm:$0xff] %v1008
        %1073 = vst [vmem:[%s279 + $0x1c0] sm:$0xff] %v1009
        %1074 = vst [vmem:[%s279 + $0x1c8] sm:$0xff] %v1010
        %1075 = vst [vmem:[%s279 + $0x1d0] sm:$0xff] %v1011
        %1076 = vst [vmem:[%s279 + $0x1d8] sm:$0xff] %v1012
        %1077 = vst [vmem:[%s279 + $0x1e0] sm:$0xff] %v1013
        %1078 = vst [vmem:[%s279 + $0x1e8] sm:$0xff] %v1014
        %1079 = vst [vmem:[%s279 + $0x1f0] sm:$0xff] %v1015
        %1080 = vst [vmem:[%s279 + $0x1f8] sm:$0xff] %v1016
        %s1081 = sand.u32 %s141, 1
        %s1082 = scalar_lea.sflag [#allocation4], %s1081
        %s1083 = sand.u32 %s141, 1
        %s1084 = smul.addr %s1083, 512
        %s1085 = scalar_lea.vmem [#allocation8], %s1084
        // Predicated region
        $region53: #{tpu_custom_call.1} parent=39 // pred_check
          %p1086 = pneg %p151
        $region54: #{tpu_custom_call.1} parent=39 // pred_check_branch
          %1088 = sbr.rel (%p1086) target = $region56
        $region55: #{tpu_custom_call.1} parent=39 // pred_region
          %s1089 = smul.u32 32, %s23
          %s1090 = ssub.s32 50, %s1089
          %p1091 = scmp.lt.s32.totalorder %s1090, 32
          %s1092 = scalar_select %p1091, %s1090, 32
          %s1093 = smul.u32 128, %s1092
          %s1094 = smul.u32 %s1093, 2
          %s1096 = ssub.s32 8192, %s1094
          %1097 = vsyncadd %s1082, %s1096
          %p1098 = scmp.ne.s32.totalorder 0, %s1094
          %s1099 = smul.addr %s1089, 2
          %s1100 = smul.addr %s1099, 128
          %s1101 = scalar_lea.hbm %s5, %s1100
          %s1102 = smul.u32 16, %s1092
          %s1103 = sshll.u32 %s1085, 4
          %s1104 = int_to_ptr.vmem [resolvable:$true] %s1103
          %s1105 = sshll.u32 %s1102, 4
          %1109 = dma.vmem_to_hbm [thread:$0]  (%p1098), %s1104, %s1105, %s1101, %s1082, 256, 256, 16
        $region56: #{tpu_custom_call.1} parent=39 // pred_fallthru
          _
      $region40: #{tpu_custom_call.1} parent=5 // pred_fallthru
        _
      %p1110 = scmp.le.s32.totalorder 2, %s18
      // Predicated region
      $region57: #{tpu_custom_call.1} parent=5 // pred_check
        %p1111 = pneg %p1110
      $region58: #{tpu_custom_call.1} parent=5 // pred_check_branch
        %1113 = sbr.rel (%p1111) target = $region60
      $region59: #{tpu_custom_call.1} parent=5 // pred_region
        %s1114 = ssub.s32 %s18, 2
        // Predicated region
        $region61: #{tpu_custom_call.1} parent=59 // pred_check
          %p1115 = pneg %p157
        $region62: #{tpu_custom_call.1} parent=59 // pred_check_branch
          %1117 = sbr.rel (%p1115) target = $region64
        $region63: #{tpu_custom_call.1} parent=59 // pred_region
          %s1118 = sand.u32 %s142, 1
          %s1119 = scalar_lea.sflag [#allocation4], %s1118
          %s1120 = sand.u32 %s142, 1
          %s1121 = smul.addr %s1120, 512
          %s1122 = scalar_lea.vmem [#allocation8], %s1121
          %1123 = dma.done %s1119, 8192
        $region64: #{tpu_custom_call.1} parent=59 // pred_fallthru
          _
      $region60: #{tpu_custom_call.1} parent=5 // pred_fallthru
        _
    $region6: #{tpu_custom_call.1} parent=1 // loop_footer
      %s22 = sadd.s32 1, %s18
    $region7: #{tpu_custom_call.1} parent=1 // loop_footer_branch
      %17 = sbr.rel target = $region3
    $region8: #{tpu_custom_call.1} parent=1 // loop_exit
      _
    %1124 = vsyncpa [#allocation3], 1
    %s1125 = scalar_lea.sflag [#allocation3], 1
    %1126 = vsyncpa %s1125, 1
    %1127 = vsyncpa [#allocation6], 1
    %1128 = vsyncpa [#allocation4], 1
    %s1129 = scalar_lea.sflag [#allocation4], 1
    %1130 = vsyncpa %s1129, 1

</llo_original>
